<compile_context>
chip_gen: v5e
topology: v5e:2x2
jax: 0.10.0
libtpu: 0.0.40
codegen_flags: <defaults>
</compile_context>

<pallas_src>
import jax
import jax.numpy as jnp
from jax.experimental import pallas as pl
from jax.experimental.pallas import tpu as pltpu


def gather_block_kernel(eff_ref, table_ref, out_ref):
    # eff_ref   : (Bp,) int32 scalar-prefetch ref in SMEM (effective labels).
    # table_ref : (V, H) full embedding table, VMEM-resident across the grid.
    # out_ref   : (TB, H) output block for this grid step.
    i = pl.program_id(0)
    tb = out_ref.shape[0]
    base = i * tb
    # Small static unrolled loop: TB dynamic row reads from the VMEM table.
    for j in range(tb):
        idx = eff_ref[base + j]
        out_ref[pl.ds(j, 1), :] = table_ref[pl.ds(idx, 1), :]


def label_embedder_forward(labels, table, *, num_classes, dropout_prob,
                           train, force_drop_ids=None, rng=None):
    """Mirrors LabelEmbedder.forward(labels, train, force_drop_ids)."""
    B = labels.shape[0]
    V, H = table.shape
    labels = labels.astype(jnp.int32)

    # --- CFG token drop (wrapper-side; trivial O(B) int ops XLA fuses) -------
    use_dropout = dropout_prob > 0
    if (train and use_dropout) or (force_drop_ids is not None):
        if force_drop_ids is None:
            if rng is None:
                raise ValueError("rng is required for training-time label dropout")
            drop = jax.random.uniform(rng, (B,)) < dropout_prob
        else:
            drop = force_drop_ids == 1
        eff = jnp.where(drop, num_classes, labels)
    else:
        eff = labels
    # Keep the in-kernel dynamic row read in-bounds.  torch would raise on OOB
    # labels; here invalid labels are clamped to the last row (documented).
    eff = jnp.clip(eff.astype(jnp.int32), 0, V - 1)

    # --- batch rows per grid step; dense (TB, H) output blocks ---------------
    TB = 16 if table.dtype == jnp.bfloat16 else 8
    Bp = ((B + TB - 1) // TB) * TB
    if Bp != B:
        eff = jnp.pad(eff, (0, Bp - B))   # O(B) pad of indices only

    dtype_bytes = jnp.dtype(table.dtype).itemsize
    cost = pl.CostEstimate(
        flops=0,
        transcendentals=0,
        bytes_accessed=(V * H + 2 * Bp * H) * dtype_bytes,
    )

    out = pl.pallas_call(
        gather_block_kernel,
        out_shape=jax.ShapeDtypeStruct((Bp, H), table.dtype),
        grid_spec=pltpu.PrefetchScalarGridSpec(
            num_scalar_prefetch=1,          # eff labels land in SMEM
            grid=(Bp // TB,),
            in_specs=[
                # Whole table as one block, same block index every step
                # -> fetched once, resident in VMEM across the grid.
                pl.BlockSpec((V, H), lambda i, eff_ref: (0, 0)),
            ],
            out_specs=pl.BlockSpec((TB, H), lambda i, eff_ref: (i, 0)),
        ),
        compiler_params=pltpu.CompilerParams(
            dimension_semantics=("parallel",)),
        cost_estimate=cost,
    )(eff, table)

    return out if Bp == B else out[:B]


if __name__ == "__main__":
    num_classes = 10
    hidden_size = 32
    dropout_prob = 0.1
    B = 8
    V = num_classes + 1  # use_cfg_embedding = dropout_prob > 0

    key = jax.random.PRNGKey(0)
    k_table, k_labels, k_drop, k_table2, k_labels2 = jax.random.split(key, 5)

    # Deterministic parameter init (nn.Embedding weight ~ N(0, 1) by default).
    table = jax.random.normal(k_table, (V, hidden_size), dtype=jnp.float32)
    labels = jax.random.randint(k_labels, (B,), 0, num_classes, dtype=jnp.int32)

    # Eval path (no dropout): check against plain gather.
    out_eval = label_embedder_forward(
        labels, table, num_classes=num_classes, dropout_prob=dropout_prob,
        train=False)
    out_eval = jax.block_until_ready(out_eval)
    ref_eval = jnp.take(table, labels, axis=0)
    assert out_eval.shape == (B, hidden_size)
    assert jnp.allclose(out_eval, ref_eval, atol=1e-6), "eval-path mismatch"

    # Train path with CFG label dropout (deterministic given rng key).
    out_train = label_embedder_forward(
        labels, table, num_classes=num_classes, dropout_prob=dropout_prob,
        train=True, rng=k_drop)
    out_train = jax.block_until_ready(out_train)
    drop_ref = jax.random.uniform(k_drop, (B,)) < dropout_prob
    eff_ref = jnp.where(drop_ref, num_classes, labels)
    ref_train = jnp.take(table, eff_ref, axis=0)
    assert jnp.allclose(out_train, ref_train, atol=1e-6), "train-path mismatch"

    # Forced-drop path (force_drop_ids == 1 -> embed the CFG "null" row).
    force_drop = jnp.array([1, 0, 1, 0, 0, 0, 0, 1], dtype=jnp.int32)
    out_forced = label_embedder_forward(
        labels, table, num_classes=num_classes, dropout_prob=dropout_prob,
        train=False, force_drop_ids=force_drop)
    out_forced = jax.block_until_ready(out_forced)
    eff_labels = jnp.where(force_drop == 1, num_classes, labels)
    ref_forced = jnp.take(table, eff_labels, axis=0)
    assert jnp.allclose(out_forced, ref_forced, atol=1e-6), "forced-drop mismatch"

    # Non-multiple-of-TB batch (exercises index pad + output slice), f32.
    labels5 = jax.random.randint(k_labels2, (5,), 0, num_classes, dtype=jnp.int32)
    out5 = label_embedder_forward(
        labels5, table, num_classes=num_classes, dropout_prob=dropout_prob,
        train=False)
    out5 = jax.block_until_ready(out5)
    assert out5.shape == (5, hidden_size)
    assert jnp.allclose(out5, jnp.take(table, labels5, axis=0), atol=1e-6), \
        "padded-batch mismatch"

    # bf16 checkpoint path (TB=16 packed blocks, dtype preserved), B=12.
    table_bf16 = jax.random.normal(k_table2, (V, 128), dtype=jnp.float32).astype(jnp.bfloat16)
    labels12 = jnp.concatenate([labels, labels5[:4]])
    out_bf16 = label_embedder_forward(
        labels12, table_bf16, num_classes=num_classes, dropout_prob=dropout_prob,
        train=False)
    out_bf16 = jax.block_until_ready(out_bf16)
    assert out_bf16.dtype == jnp.bfloat16 and out_bf16.shape == (12, 128)
    assert jnp.array_equal(out_bf16, jnp.take(table_bf16, labels12, axis=0)), \
        "bf16-path mismatch"

    print("KERNEL_OK")
</pallas_src>

<mosaic_0001>
module attributes {stable_mosaic.version = 11 : i64} {
  func.func @gather_block_kernel(%arg0: i32, %arg1: memref<8xi32, #tpu.memory_space<smem>>, %arg2: memref<11x32xf32, #tpu.memory_space<vmem>>, %arg3: memref<8x32xf32, #tpu.memory_space<vmem>>) attributes {dimension_semantics = [#tpu.dimension_semantics<parallel>], iteration_bounds = array<i64: 1>, scalar_prefetch = 1 : i64, scratch_operands = 0 : i64, tpu.core_type = #tpu.core_type<tc>, window_params = [{pipeline_mode = #tpu.pipeline_mode<synchronous>, transform_indices = @transform_0, window_bounds = array<i64: 11, 32>}, {transform_indices = @transform_1, window_bounds = array<i64: 8, 32>}]} {
    %c8_i32 = arith.constant 8 : i32
    %0 = arith.muli %arg0, %c8_i32 : i32
    %c0_i32 = arith.constant 0 : i32
    %1 = arith.addi %0, %c0_i32 : i32
    %2 = arith.index_cast %1 : i32 to index
    %3 = memref.load %arg1[%2] : memref<8xi32, #tpu.memory_space<smem>>
    %4 = arith.index_cast %3 : i32 to index
    %c0 = arith.constant 0 : index
    %5 = vector.load %arg2[%4, %c0] : memref<11x32xf32, #tpu.memory_space<vmem>>, vector<1x32xf32>
    %c0_0 = arith.constant 0 : index
    %c0_1 = arith.constant 0 : index
    %6 = vector.load %arg3[%c0_0, %c0_1] : memref<8x32xf32, #tpu.memory_space<vmem>>, vector<1x32xf32>
    tpu.vector_store %arg3[%c0_0, %c0_1], %5 {strides = array<i32>} : memref<8x32xf32, #tpu.memory_space<vmem>>, vector<1x32xf32>,
    %c1_i32 = arith.constant 1 : i32
    %7 = arith.addi %0, %c1_i32 : i32
    %8 = arith.index_cast %7 : i32 to index
    %9 = memref.load %arg1[%8] : memref<8xi32, #tpu.memory_space<smem>>
    %10 = arith.index_cast %9 : i32 to index
    %c0_2 = arith.constant 0 : index
    %11 = vector.load %arg2[%10, %c0_2] : memref<11x32xf32, #tpu.memory_space<vmem>>, vector<1x32xf32>
    %c1 = arith.constant 1 : index
    %c0_3 = arith.constant 0 : index
    %12 = vector.load %arg3[%c1, %c0_3] : memref<8x32xf32, #tpu.memory_space<vmem>>, vector<1x32xf32>
    tpu.vector_store %arg3[%c1, %c0_3], %11 {strides = array<i32>} : memref<8x32xf32, #tpu.memory_space<vmem>>, vector<1x32xf32>,
    %c2_i32 = arith.constant 2 : i32
    %13 = arith.addi %0, %c2_i32 : i32
    %14 = arith.index_cast %13 : i32 to index
    %15 = memref.load %arg1[%14] : memref<8xi32, #tpu.memory_space<smem>>
    %16 = arith.index_cast %15 : i32 to index
    %c0_4 = arith.constant 0 : index
    %17 = vector.load %arg2[%16, %c0_4] : memref<11x32xf32, #tpu.memory_space<vmem>>, vector<1x32xf32>
    %c2 = arith.constant 2 : index
    %c0_5 = arith.constant 0 : index
    %18 = vector.load %arg3[%c2, %c0_5] : memref<8x32xf32, #tpu.memory_space<vmem>>, vector<1x32xf32>
    tpu.vector_store %arg3[%c2, %c0_5], %17 {strides = array<i32>} : memref<8x32xf32, #tpu.memory_space<vmem>>, vector<1x32xf32>,
    %c3_i32 = arith.constant 3 : i32
    %19 = arith.addi %0, %c3_i32 : i32
    %20 = arith.index_cast %19 : i32 to index
    %21 = memref.load %arg1[%20] : memref<8xi32, #tpu.memory_space<smem>>
    %22 = arith.index_cast %21 : i32 to index
    %c0_6 = arith.constant 0 : index
    %23 = vector.load %arg2[%22, %c0_6] : memref<11x32xf32, #tpu.memory_space<vmem>>, vector<1x32xf32>
    %c3 = arith.constant 3 : index
    %c0_7 = arith.constant 0 : index
    %24 = vector.load %arg3[%c3, %c0_7] : memref<8x32xf32, #tpu.memory_space<vmem>>, vector<1x32xf32>
    tpu.vector_store %arg3[%c3, %c0_7], %23 {strides = array<i32>} : memref<8x32xf32, #tpu.memory_space<vmem>>, vector<1x32xf32>,
    %c4_i32 = arith.constant 4 : i32
    %25 = arith.addi %0, %c4_i32 : i32
    %26 = arith.index_cast %25 : i32 to index
    %27 = memref.load %arg1[%26] : memref<8xi32, #tpu.memory_space<smem>>
    %28 = arith.index_cast %27 : i32 to index
    %c0_8 = arith.constant 0 : index
    %29 = vector.load %arg2[%28, %c0_8] : memref<11x32xf32, #tpu.memory_space<vmem>>, vector<1x32xf32>
    %c4 = arith.constant 4 : index
    %c0_9 = arith.constant 0 : index
    %30 = vector.load %arg3[%c4, %c0_9] : memref<8x32xf32, #tpu.memory_space<vmem>>, vector<1x32xf32>
    tpu.vector_store %arg3[%c4, %c0_9], %29 {strides = array<i32>} : memref<8x32xf32, #tpu.memory_space<vmem>>, vector<1x32xf32>,
    %c5_i32 = arith.constant 5 : i32
    %31 = arith.addi %0, %c5_i32 : i32
    %32 = arith.index_cast %31 : i32 to index
    %33 = memref.load %arg1[%32] : memref<8xi32, #tpu.memory_space<smem>>
    %34 = arith.index_cast %33 : i32 to index
    %c0_10 = arith.constant 0 : index
    %35 = vector.load %arg2[%34, %c0_10] : memref<11x32xf32, #tpu.memory_space<vmem>>, vector<1x32xf32>
    %c5 = arith.constant 5 : index
    %c0_11 = arith.constant 0 : index
    %36 = vector.load %arg3[%c5, %c0_11] : memref<8x32xf32, #tpu.memory_space<vmem>>, vector<1x32xf32>
    tpu.vector_store %arg3[%c5, %c0_11], %35 {strides = array<i32>} : memref<8x32xf32, #tpu.memory_space<vmem>>, vector<1x32xf32>,
    %c6_i32 = arith.constant 6 : i32
    %37 = arith.addi %0, %c6_i32 : i32
    %38 = arith.index_cast %37 : i32 to index
    %39 = memref.load %arg1[%38] : memref<8xi32, #tpu.memory_space<smem>>
    %40 = arith.index_cast %39 : i32 to index
    %c0_12 = arith.constant 0 : index
    %41 = vector.load %arg2[%40, %c0_12] : memref<11x32xf32, #tpu.memory_space<vmem>>, vector<1x32xf32>
    %c6 = arith.constant 6 : index
    %c0_13 = arith.constant 0 : index
    %42 = vector.load %arg3[%c6, %c0_13] : memref<8x32xf32, #tpu.memory_space<vmem>>, vector<1x32xf32>
    tpu.vector_store %arg3[%c6, %c0_13], %41 {strides = array<i32>} : memref<8x32xf32, #tpu.memory_space<vmem>>, vector<1x32xf32>,
    %c7_i32 = arith.constant 7 : i32
    %43 = arith.addi %0, %c7_i32 : i32
    %44 = arith.index_cast %43 : i32 to index
    %45 = memref.load %arg1[%44] : memref<8xi32, #tpu.memory_space<smem>>
    %46 = arith.index_cast %45 : i32 to index
    %c0_14 = arith.constant 0 : index
    %47 = vector.load %arg2[%46, %c0_14] : memref<11x32xf32, #tpu.memory_space<vmem>>, vector<1x32xf32>
    %c7 = arith.constant 7 : index
    %c0_15 = arith.constant 0 : index
    %48 = vector.load %arg3[%c7, %c0_15] : memref<8x32xf32, #tpu.memory_space<vmem>>, vector<1x32xf32>
    tpu.vector_store %arg3[%c7, %c0_15], %47 {strides = array<i32>} : memref<8x32xf32, #tpu.memory_space<vmem>>, vector<1x32xf32>,
    return
  }
  func.func @transform_0(%arg0: i32, %arg1: memref<8xi32, #tpu.memory_space<smem>>) -> (i32, i32) {
    %c0_i32 = arith.constant 0 : i32
    %c0_i32_0 = arith.constant 0 : i32
    %c0_i32_1 = arith.constant 0 : i32
    return %c0_i32, %c0_i32_0 : i32, i32
  }
  func.func @transform_1(%arg0: i32, %arg1: memref<8xi32, #tpu.memory_space<smem>>) -> (i32, i32) {
    %c0_i32 = arith.constant 0 : i32
    %c0_i32_0 = arith.constant 0 : i32
    return %arg0, %c0_i32 : i32, i32
  }
}

</mosaic_0001>

<llo_original>
// kernel: tpu_custom_call.1
$region0: #{tpu_custom_call.1}
  #allocation0 [shape = 'u32[]', space=smem, size = 0x4, offset = 0x4, fixed_abs, tag = 'smem constant byte address 0x4 - core index']
  #allocation1 [shape = 'u32[72,128]{1,0:T(1,128)}', space=vmem, size = 0x9000, scoped, tag = 'internal scratch']
  #allocation2 [shape = 's32[1]{0}', space=sflag, size = 0x4, scoped, tag = 'scoped memory for tpu_custom_call.1']
  #allocation3 [shape = 'u8[512]{0}', space=smem, size = 0x200, scoped, tag = 'prefetched SMEM operand 0']
  %s0 = inlined_call_operand.hbm [shape: s32[8], index: 0, kind: input, shape index: {}]
  %s1 = inlined_call_operand.hbm [shape: f32[11,32], index: 1, kind: input, shape index: {}]
  %s2 = inlined_call_operand.hbm [shape: f32[8,32], index: 2, kind: output, shape index: {}]
  %s3 = sld [smem:[#allocation0]]
  $region18: #{tpu_custom_call.1} parent=0
    _
  %s5 = ssub.s32 1, %s3
  %s6 = scalar_select 0, %s5, %s3
  %s8 = sshll.u32 %s0, 4
  %s9 = int_to_ptr.hbm [resolvable:$true] %s8
  %11 = dma.hbm_to_smem %s9, 16, [#allocation3], [#allocation2]
  %13 = dma.done [#allocation2], 16
  %14 = sfence
  $region1: #{tpu_custom_call.1} parent=0
    #allocation4 [shape = 'u8[8192]{0}', space=vmem, size = 0x2000, scoped, tag = 'input window, operand 1, single buffered']
    #allocation5 [shape = 's32[1]{0}', space=sflag, size = 0x4, scoped, tag = 'scoped memory for tpu_custom_call.1']
    #allocation6 [shape = 's32[1]{0}', space=sflag, size = 0x4, scoped, tag = 'scoped memory for tpu_custom_call.1']
    #allocation7 [shape = 'u8[4096]{0}', space=vmem, size = 0x1000, scoped, tag = 'output window, operand 0, single buffered']
    %15 = vsyncpa [#allocation5], 0
    %16 = vsyncpa [#allocation6], 0
    // Predicated region
    $region2: #{tpu_custom_call.1} parent=1 // pred_check
      _
    $region3: #{tpu_custom_call.1} parent=1 // pred_check_branch
      %18 = sbr.rel (0) target = $region5
    $region4: #{tpu_custom_call.1} parent=1 // pred_region
      %20 = vsyncadd [#allocation5], 0
      %s21 = sshll.u32 %s1, 4
      %s22 = int_to_ptr.hbm [resolvable:$true] %s21
      %s23 = sshll.u32 [#allocation4], 4
      %s24 = int_to_ptr.vmem [resolvable:$true] %s23
      %29 = dma.hbm_to_vmem [thread:$0]  %s22, 256, %s24, [#allocation5], 128, 128, 8
    $region5: #{tpu_custom_call.1} parent=1 // pred_fallthru
      _
    // Predicated region
    $region6: #{tpu_custom_call.1} parent=1 // pred_check
      _
    $region7: #{tpu_custom_call.1} parent=1 // pred_check_branch
      %31 = sbr.rel (0) target = $region9
    $region8: #{tpu_custom_call.1} parent=1 // pred_region
      %33 = dma.done [#allocation5], 256
    $region9: #{tpu_custom_call.1} parent=1 // pred_fallthru
      _
    %s34 = smul.u32 0, 8
    %s35 = sld [smem:[#allocation3 + %s34]]
    %s36 = scalar_lea.vmem [#allocation4], %s35
    %v37 = vld [vmem:[%s36] sm:$0x1]
    %vm38 = vcmask 253952
    %39 = vst.msk [vmem:[#allocation7] sm:$0x1] %vm38, %v37
    %s40 = sadd.s32 %s34, 1
    %s41 = sld [smem:[#allocation3 + %s40]]
    %s42 = scalar_lea.vmem [#allocation4], %s41
    %v43 = vld [vmem:[%s42] sm:$0x1]
    %44 = vst.msk [vmem:[#allocation7 + $0x1] sm:$0x1] %vm38, %v43
    %s45 = sadd.s32 %s34, 2
    %s46 = sld [smem:[#allocation3 + %s45]]
    %s47 = scalar_lea.vmem [#allocation4], %s46
    %v48 = vld [vmem:[%s47] sm:$0x1]
    %49 = vst.msk [vmem:[#allocation7 + $0x2] sm:$0x1] %vm38, %v48
    %s50 = sadd.s32 %s34, 3
    %s51 = sld [smem:[#allocation3 + %s50]]
    %s52 = scalar_lea.vmem [#allocation4], %s51
    %v53 = vld [vmem:[%s52] sm:$0x1]
    %54 = vst.msk [vmem:[#allocation7 + $0x3] sm:$0x1] %vm38, %v53
    %s55 = sadd.s32 %s34, 4
    %s56 = sld [smem:[#allocation3 + %s55]]
    %s57 = scalar_lea.vmem [#allocation4], %s56
    %v58 = vld [vmem:[%s57] sm:$0x1]
    %59 = vst.msk [vmem:[#allocation7 + $0x4] sm:$0x1] %vm38, %v58
    %s60 = sadd.s32 %s34, 5
    %s61 = sld [smem:[#allocation3 + %s60]]
    %s62 = scalar_lea.vmem [#allocation4], %s61
    %v63 = vld [vmem:[%s62] sm:$0x1]
    %64 = vst.msk [vmem:[#allocation7 + $0x5] sm:$0x1] %vm38, %v63
    %s65 = sadd.s32 %s34, 6
    %s66 = sld [smem:[#allocation3 + %s65]]
    %s67 = scalar_lea.vmem [#allocation4], %s66
    %v68 = vld [vmem:[%s67] sm:$0x1]
    %69 = vst.msk [vmem:[#allocation7 + $0x6] sm:$0x1] %vm38, %v68
    %s70 = sadd.s32 %s34, 7
    %s71 = sld [smem:[#allocation3 + %s70]]
    %s72 = scalar_lea.vmem [#allocation4], %s71
    %v73 = vld [vmem:[%s72] sm:$0x1]
    %74 = vst.msk [vmem:[#allocation7 + $0x7] sm:$0x1] %vm38, %v73
    // Predicated region
    $region10: #{tpu_custom_call.1} parent=1 // pred_check
      _
    $region11: #{tpu_custom_call.1} parent=1 // pred_check_branch
      %76 = sbr.rel (0) target = $region13
    $region12: #{tpu_custom_call.1} parent=1 // pred_region
      %78 = vsyncadd [#allocation6], 0
      %s80 = sshll.u32 [#allocation7], 4
      %s81 = int_to_ptr.vmem [resolvable:$true] %s80
      %s82 = sshll.u32 %s2, 4
      %s83 = int_to_ptr.hbm [resolvable:$true] %s82
      %85 = dma.vmem_to_hbm [thread:$0]  %s81, 128, %s83, [#allocation6]
    $region13: #{tpu_custom_call.1} parent=1 // pred_fallthru
      _
    // Predicated region
    $region14: #{tpu_custom_call.1} parent=1 // pred_check
      _
    $region15: #{tpu_custom_call.1} parent=1 // pred_check_branch
      %87 = sbr.rel (0) target = $region17
    $region16: #{tpu_custom_call.1} parent=1 // pred_region
      %89 = dma.done [#allocation6], 128
    $region17: #{tpu_custom_call.1} parent=1 // pred_fallthru
      _
    %90 = vsyncpa [#allocation5], 1
    %91 = vsyncpa [#allocation6], 1

</llo_original>
